<compile_context>
chip_gen: v5e
topology: v5e:2x2
jax: 0.10.0
libtpu: 0.0.40
codegen_flags: <defaults>
</compile_context>

<pallas_src>
import functools

import jax
import jax.numpy as jnp
from jax.experimental import pallas as pl
from jax.experimental.pallas import tpu as pltpu

_SELU_ALPHA = 1.6732632423543772
_SELU_SCALE = 1.0507009873554805
_LANE = 128
_NEG_INF = -1e30


# ----------------------------- small helpers --------------------------------

def _round_up(x, m):
    return ((x + m - 1) // m) * m


def _pad_cols(arr, cols, val=0.0):
    pad = cols - arr.shape[-1]
    if pad <= 0:
        return arr
    return jnp.pad(arr, ((0, 0), (0, pad)), constant_values=val)


def _pad2(arr, rows, cols):
    return jnp.pad(arr, ((0, rows - arr.shape[0]), (0, cols - arr.shape[1])))


def _fit_rows(arr, rows):
    cur = arr.shape[0]
    if cur == rows:
        return arr
    if cur > rows:
        return arr[:rows]
    return jnp.pad(arr, ((0, rows - cur), (0, 0)))


def _selu(x):
    alpha = jnp.asarray(_SELU_ALPHA, x.dtype)
    scale = jnp.asarray(_SELU_SCALE, x.dtype)
    return scale * jnp.where(x > 0, x, alpha * (jnp.exp(x) - 1))


def _has_bf16_vpu():
    """bf16 VALU/EUP exist on v6e / v7x; fall back to f32 elsewhere."""
    try:
        kind = jax.devices()[0].device_kind.lower()
    except Exception:
        return False
    return any(t in kind for t in ("v6", "v7", "tpu7"))


# ----------------------------- per-layer kernel ------------------------------

def _sage_layer_kernel(a_ref, hsrc_ref, hdst_ref, wcat_ref, b_ref, out_ref,
                       lhs_ref, *, feat_p, activation, epilogue_dtype):
    """One SAGEConv(mean) layer.

    grid = (dst_tiles [parallel], src_chunks [arbitrary]).
    lhs_ref: (TD, 2*feat_p) f32 VMEM scratch; lanes [0, feat_p) hold h_dst
    (self term), lanes [feat_p, 2*feat_p) accumulate A_tile @ h_chunk.
    At the last src chunk a single K-packed matmul + bias + activation runs.
    """
    k = pl.program_id(1)
    last = pl.num_programs(1) - 1

    @pl.when(k == 0)
    def _init():
        hd = hdst_ref[...].astype(jnp.float32)
        lhs_ref[:, :feat_p] = hd
        lhs_ref[:, feat_p:] = jnp.zeros_like(hd)

    # Mean aggregation (A already row-normalized): partial sum, f32 accumulate.
    lhs_ref[:, feat_p:] += jnp.dot(a_ref[...], hsrc_ref[...],
                                   preferred_element_type=jnp.float32)

    @pl.when(k == last)
    def _finalize():
        lhs = lhs_ref[...].astype(wcat_ref.dtype)          # bf16 for the MXU
        z = jnp.dot(lhs, wcat_ref[...], preferred_element_type=jnp.float32)
        z = z + b_ref[...]
        if activation == "selu":
            out_ref[...] = _selu(z.astype(epilogue_dtype)).astype(out_ref.dtype)
        elif activation == "softmax":
            # Padded class lanes carry bias = -1e30 -> exp() == 0, so they do
            # not perturb the max or the normalization sum.
            z = z - jnp.max(z, axis=1, keepdims=True)
            e = jnp.exp(z)
            p = e * pl.reciprocal(jnp.sum(e, axis=1, keepdims=True), approx=True)
            out_ref[...] = p.astype(out_ref.dtype)
        else:  # sigmoid (n_classes == 1)
            out_ref[...] = (1.0 / (1.0 + jnp.exp(-z))).astype(out_ref.dtype)


# ----------------------------- forward wrapper -------------------------------

def graphsage_forward(blocks, x, params, n_classes, *, tile_dst=128, tile_src=512):
    """GraphSAGE forward: one gridded pallas_call per SAGEConv layer."""
    assert tile_dst % 16 == 0, "tile_dst must be a sublane multiple (16 for bf16)"
    assert tile_src % _LANE == 0, "tile_src must be a lane multiple (128)"

    n_layers = len(params)
    last_activation = "softmax" if n_classes > 1 else "sigmoid"
    epilogue_dtype = jnp.bfloat16 if _has_bf16_vpu() else jnp.float32

    # Lane-pad features once; all hidden dims pad to the same 128 multiple.
    h = _pad_cols(x, _round_up(x.shape[1], _LANE)).astype(jnp.bfloat16)

    for i, ((a_norm, n_dst), (w_self, w_neigh, bias)) in enumerate(zip(blocks, params)):
        is_last = (i == n_layers - 1)
        feat, odim = w_self.shape
        fp = _round_up(feat, _LANE)
        op = _round_up(odim, _LANE)

        n_dst_r, n_src_r = a_norm.shape
        td = min(tile_dst, _round_up(n_dst_r, 16))
        ts = min(tile_src, _round_up(n_src_r, _LANE))
        n_dst_p = _round_up(n_dst_r, td)
        n_src_p = _round_up(n_src_r, ts)

        # --- operand padding / packing (all unmasked-aligned) ----------------
        # NOTE: bf16 adjacency means rows no longer sum to exactly 1
        # (~0.3% rel error); acceptable here, keep f32 if tighter accuracy
        # is required.
        a_p = _pad2(a_norm, n_dst_p, n_src_p).astype(jnp.bfloat16)
        h_src = _fit_rows(h, n_src_p)                    # bf16 [n_src_p, fp]
        h_dst = _fit_rows(h_src, n_dst_p)                # bf16 [n_dst_p, fp]
        w_cat = jnp.concatenate(
            [_pad2(w_self, fp, op), _pad2(w_neigh, fp, op)], axis=0
        ).astype(jnp.bfloat16)                           # [2*fp, op]
        pad_bias = _NEG_INF if (is_last and last_activation == "softmax") else 0.0
        b_p = _pad_cols(bias.reshape(1, -1).astype(jnp.float32), op, pad_bias)

        out_dtype = jnp.float32 if is_last else jnp.bfloat16
        out_bytes = jnp.dtype(out_dtype).itemsize
        grid = (n_dst_p // td, n_src_p // ts)

        kernel = functools.partial(
            _sage_layer_kernel,
            feat_p=fp,
            activation=(last_activation if is_last else "selu"),
            epilogue_dtype=epilogue_dtype,
        )

        # Advisory cost estimate for XLA scheduling around the custom call.
        flops = 2.0 * n_dst_p * n_src_p * fp + 2.0 * n_dst_p * (2 * fp) * op
        bytes_acc = (a_p.size * 2 + h_src.size * 2 + h_dst.size * 2
                     + w_cat.size * 2 + b_p.size * 4 + n_dst_p * op * out_bytes)
        cost = pl.CostEstimate(flops=int(flops),
                               transcendentals=int(n_dst_p * op),
                               bytes_accessed=int(bytes_acc))

        # Explicit VMEM budget (double-buffered blocks + scratch + headroom);
        # v7x has only 64 MiB physical VMEM per TensorCore.
        step_bytes = (td * ts * 2 + ts * fp * 2 + td * fp * 2
                      + 2 * fp * op * 2 + 8 * op * 4 + td * op * out_bytes)
        vmem_limit = int(min(64 * 2**20,
                             max(8 * 2**20, 6 * step_bytes + td * 2 * fp * 4)))

        h = pl.pallas_call(
            kernel,
            out_shape=jax.ShapeDtypeStruct((n_dst_p, op), out_dtype),
            grid_spec=pltpu.PrefetchScalarGridSpec(
                num_scalar_prefetch=0,
                grid=grid,
                in_specs=[
                    pl.BlockSpec((td, ts), lambda i, k: (i, k)),      # A tile
                    pl.BlockSpec((ts, fp), lambda i, k: (k, 0)),      # h_src chunk
                    pl.BlockSpec((td, fp), lambda i, k: (i, 0)),      # h_dst tile
                    pl.BlockSpec((2 * fp, op), lambda i, k: (0, 0)),  # packed W
                    pl.BlockSpec((1, op), lambda i, k: (0, 0)),       # bias
                ],
                out_specs=pl.BlockSpec((td, op), lambda i, k: (i, 0)),
                scratch_shapes=[pltpu.VMEM((td, 2 * fp), jnp.float32)],
            ),
            compiler_params=pltpu.CompilerParams(
                dimension_semantics=("parallel", "arbitrary"),
                vmem_limit_bytes=vmem_limit,
            ),
            cost_estimate=cost,
        )(a_p, h_src, h_dst, w_cat, b_p)

    # Strip row padding and padded class lanes (the -1e30 bias trick makes the
    # padded columns exact zeros after softmax, but they must not be returned).
    return h[:blocks[-1][1], :n_classes]


# ----------------------------- reference (pure JAX, f32) ---------------------

def _reference_forward(blocks, x, params, n_classes):
    h = x
    n_layers = len(params)
    for i in range(n_layers - 1):
        a_norm, n_dst = blocks[i]
        w_self, w_neigh, bias = params[i]
        z = h[:n_dst] @ w_self + (a_norm @ h) @ w_neigh + bias
        h = _selu(z)
    a_norm, n_dst = blocks[-1]
    w_self, w_neigh, bias = params[-1]
    z = h[:n_dst] @ w_self + (a_norm @ h) @ w_neigh + bias
    if n_classes > 1:
        return jax.nn.softmax(z, axis=1)
    return jax.nn.sigmoid(z)


# ----------------------------- input construction ----------------------------

def make_block(key, n_dst, n_src, p=0.3):
    """Dense random block graph -> row-normalized adjacency [n_dst, n_src]."""
    adj = (jax.random.uniform(key, (n_dst, n_src)) < p).astype(jnp.float32)
    adj = adj.at[jnp.arange(n_dst), jnp.arange(n_dst)].set(1.0)  # self edge
    deg = jnp.maximum(jnp.sum(adj, axis=1, keepdims=True), 1.0)
    return adj / deg


def make_sage_params(key, in_dim, out_dim):
    k1, k2, k3 = jax.random.split(key, 3)
    scale = 1.0 / jnp.sqrt(jnp.float32(in_dim))
    w_self = jax.random.normal(k1, (in_dim, out_dim), jnp.float32) * scale
    w_neigh = jax.random.normal(k2, (in_dim, out_dim), jnp.float32) * scale
    bias = jax.random.normal(k3, (1, out_dim), jnp.float32) * 0.01
    return (w_self, w_neigh, bias)


if __name__ == "__main__":
    # Model config: in_feats=32, n_hidden=32, n_classes=8, n_layers=2
    in_feats, n_hidden, n_classes, n_layers = 32, 32, 8, 2

    key = jax.random.PRNGKey(0)
    k_x, k_b0, k_b1, k_p0, k_p1 = jax.random.split(key, 5)

    # Block 0: 320 src -> 192 dst ; Block 1: 192 src -> 96 dst.
    # Sizes chosen so both grid axes (parallel dst tiles, src reduction chunks)
    # have multiple steps with tile_dst=64, tile_src=128.
    n0_src, n0_dst, n1_dst = 320, 192, 96
    x = jax.random.normal(k_x, (n0_src, in_feats), jnp.float32)

    blocks = [
        (make_block(k_b0, n0_dst, n0_src), n0_dst),
        (make_block(k_b1, n1_dst, n0_dst), n1_dst),
    ]
    params = [
        make_sage_params(k_p0, in_feats, n_hidden),
        make_sage_params(k_p1, n_hidden, n_classes),
    ]

    out = graphsage_forward(blocks, x, params, n_classes,
                            tile_dst=64, tile_src=128)
    out = jax.block_until_ready(out)

    assert out.shape == (n1_dst, n_classes)
    # softmax rows must sum to ~1 (approx reciprocal -> slightly loose tol)
    assert jnp.allclose(jnp.sum(out, axis=1), 1.0, atol=1e-2)
    # compare against an f32 pure-JAX reference (bf16 MXU operands -> loose tol)
    ref = _reference_forward(blocks, x, params, n_classes)
    err = float(jnp.max(jnp.abs(out - ref)))
    assert jnp.allclose(out, ref, atol=4e-2), err
    print("KERNEL_OK")
</pallas_src>

<mosaic_0001>
module attributes {stable_mosaic.version = 11 : i64} {
  func.func @_sage_layer_kernel(%arg0: i32, %arg1: i32, %arg2: memref<64x128xbf16, #tpu.memory_space<vmem>>, %arg3: memref<128x128xbf16, #tpu.memory_space<vmem>>, %arg4: memref<64x128xbf16, #tpu.memory_space<vmem>>, %arg5: memref<256x128xbf16, #tpu.memory_space<vmem>>, %arg6: memref<1x128xf32, #tpu.memory_space<vmem>>, %arg7: memref<64x128xbf16, #tpu.memory_space<vmem>>, %arg8: memref<64x256xf32, #tpu.memory_space<vmem>>) attributes {dimension_semantics = [#tpu.dimension_semantics<parallel>, #tpu.dimension_semantics<arbitrary>], iteration_bounds = array<i64: 3, 3>, scalar_prefetch = 0 : i64, scratch_operands = 1 : i64, tpu.core_type = #tpu.core_type<tc>, window_params = [{transform_indices = @transform_0, window_bounds = array<i64: 64, 128>}, {transform_indices = @transform_1, window_bounds = array<i64: 128, 128>}, {transform_indices = @transform_2, window_bounds = array<i64: 64, 128>}, {pipeline_mode = #tpu.pipeline_mode<synchronous>, transform_indices = @transform_3, window_bounds = array<i64: 256, 128>}, {pipeline_mode = #tpu.pipeline_mode<synchronous>, transform_indices = @transform_4, window_bounds = array<i64: 1, 128>}, {transform_indices = @transform_5, window_bounds = array<i64: 64, 128>}]} {
    %c0_i32 = arith.constant 0 : i32
    %0 = arith.cmpi eq, %arg1, %c0_i32 : i32
    %1 = arith.extui %0 : i1 to i32
    %c0_i32_0 = arith.constant 0 : i32
    %2 = arith.cmpi ne, %1, %c0_i32_0 : i32
    scf.if %2 {
      %c0_8 = arith.constant 0 : index
      %c0_9 = arith.constant 0 : index
      %12 = vector.load %arg4[%c0_8, %c0_9] : memref<64x128xbf16, #tpu.memory_space<vmem>>, vector<64x128xbf16>
      %13 = arith.extf %12 : vector<64x128xbf16> to vector<64x128xf32>
      %c0_10 = arith.constant 0 : index
      %c0_11 = arith.constant 0 : index
      %14 = vector.load %arg8[%c0_10, %c0_11] : memref<64x256xf32, #tpu.memory_space<vmem>>, vector<64x128xf32>
      tpu.vector_store %arg8[%c0_10, %c0_11], %13 {strides = array<i32>} : memref<64x256xf32, #tpu.memory_space<vmem>>, vector<64x128xf32>,
      %cst_12 = arith.constant 0.000000e+00 : f32
      %15 = vector.broadcast %cst_12 : f32 to vector<64x128xf32>
      %c0_13 = arith.constant 0 : index
      %c128_14 = arith.constant 128 : index
      %16 = vector.load %arg8[%c0_13, %c128_14] : memref<64x256xf32, #tpu.memory_space<vmem>>, vector<64x128xf32>
      tpu.vector_store %arg8[%c0_13, %c128_14], %15 {strides = array<i32>} : memref<64x256xf32, #tpu.memory_space<vmem>>, vector<64x128xf32>,
    } else {
    }
    %c0 = arith.constant 0 : index
    %c128 = arith.constant 128 : index
    %3 = vector.load %arg8[%c0, %c128] : memref<64x256xf32, #tpu.memory_space<vmem>>, vector<64x128xf32>
    %c0_1 = arith.constant 0 : index
    %c0_2 = arith.constant 0 : index
    %4 = vector.load %arg2[%c0_1, %c0_2] : memref<64x128xbf16, #tpu.memory_space<vmem>>, vector<64x128xbf16>
    %c0_3 = arith.constant 0 : index
    %c0_4 = arith.constant 0 : index
    %5 = vector.load %arg3[%c0_3, %c0_4] : memref<128x128xbf16, #tpu.memory_space<vmem>>, vector<128x128xbf16>
    %cst = arith.constant dense<0.000000e+00> : vector<64x128xf32>
    %6 = tpu.matmul %4, %5, %cst {dimension_numbers = #tpu.dot_dimension_numbers<[1], [0], [0], [1], [0, 0, 1, 1], [], []>} : vector<64x128xbf16>, vector<128x128xbf16>, vector<64x128xf32> -> vector<64x128xf32>
    %7 = arith.addf %3, %6 : vector<64x128xf32>
    %c0_5 = arith.constant 0 : index
    %c128_6 = arith.constant 128 : index
    %8 = vector.load %arg8[%c0_5, %c128_6] : memref<64x256xf32, #tpu.memory_space<vmem>>, vector<64x128xf32>
    tpu.vector_store %arg8[%c0_5, %c128_6], %7 {strides = array<i32>} : memref<64x256xf32, #tpu.memory_space<vmem>>, vector<64x128xf32>,
    %c2_i32 = arith.constant 2 : i32
    %9 = arith.cmpi eq, %arg1, %c2_i32 : i32
    %10 = arith.extui %9 : i1 to i32
    %c0_i32_7 = arith.constant 0 : i32
    %11 = arith.cmpi ne, %10, %c0_i32_7 : i32
    scf.if %11 {
      %c0_8 = arith.constant 0 : index
      %c0_9 = arith.constant 0 : index
      %12 = vector.load %arg8[%c0_8, %c0_9] : memref<64x256xf32, #tpu.memory_space<vmem>>, vector<64x256xf32>
      %13 = arith.truncf %12 : vector<64x256xf32> to vector<64x256xbf16>
      %c0_10 = arith.constant 0 : index
      %c0_11 = arith.constant 0 : index
      %14 = vector.load %arg5[%c0_10, %c0_11] : memref<256x128xbf16, #tpu.memory_space<vmem>>, vector<256x128xbf16>
      %cst_12 = arith.constant dense<0.000000e+00> : vector<64x128xf32>
      %15 = tpu.matmul %13, %14, %cst_12 {dimension_numbers = #tpu.dot_dimension_numbers<[1], [0], [0], [1], [0, 0, 1, 1], [], []>} : vector<64x256xbf16>, vector<256x128xbf16>, vector<64x128xf32> -> vector<64x128xf32>
      %c0_13 = arith.constant 0 : index
      %c0_14 = arith.constant 0 : index
      %16 = vector.load %arg6[%c0_13, %c0_14] : memref<1x128xf32, #tpu.memory_space<vmem>>, vector<1x128xf32>
      %17 = vector.broadcast %16 : vector<1x128xf32> to vector<64x128xf32>
      %18 = arith.addf %15, %17 : vector<64x128xf32>
      %cst_15 = arith.constant 0.000000e+00 : f32
      %19 = vector.broadcast %cst_15 : f32 to vector<64x128xf32>
      %20 = arith.cmpf ogt, %18, %19 : vector<64x128xf32>
      %21 = math.exp %18 : vector<64x128xf32>
      %cst_16 = arith.constant 1.000000e+00 : f32
      %22 = vector.broadcast %cst_16 : f32 to vector<64x128xf32>
      %23 = arith.subf %21, %22 : vector<64x128xf32>
      %cst_17 = arith.constant 1.67326319 : f32
      %24 = vector.broadcast %cst_17 : f32 to vector<64x128xf32>
      %25 = arith.mulf %24, %23 : vector<64x128xf32>
      %26 = arith.select %20, %18, %25 : vector<64x128xi1>, vector<64x128xf32>
      %cst_18 = arith.constant 1.05070102 : f32
      %27 = vector.broadcast %cst_18 : f32 to vector<64x128xf32>
      %28 = arith.mulf %27, %26 : vector<64x128xf32>
      %29 = arith.truncf %28 : vector<64x128xf32> to vector<64x128xbf16>
      %c0_19 = arith.constant 0 : index
      %c0_20 = arith.constant 0 : index
      %30 = vector.load %arg7[%c0_19, %c0_20] : memref<64x128xbf16, #tpu.memory_space<vmem>>, vector<64x128xbf16>
      tpu.vector_store %arg7[%c0_19, %c0_20], %29 {strides = array<i32>} : memref<64x128xbf16, #tpu.memory_space<vmem>>, vector<64x128xbf16>,
    } else {
    }
    return
  }
  func.func @transform_0(%arg0: i32, %arg1: i32) -> (i32, i32) {
    %c0_i32 = arith.constant 0 : i32
    return %arg0, %arg1 : i32, i32
  }
  func.func @transform_1(%arg0: i32, %arg1: i32) -> (i32, i32) {
    %c0_i32 = arith.constant 0 : i32
    %c0_i32_0 = arith.constant 0 : i32
    return %arg1, %c0_i32 : i32, i32
  }
  func.func @transform_2(%arg0: i32, %arg1: i32) -> (i32, i32) {
    %c0_i32 = arith.constant 0 : i32
    %c0_i32_0 = arith.constant 0 : i32
    return %arg0, %c0_i32 : i32, i32
  }
  func.func @transform_3(%arg0: i32, %arg1: i32) -> (i32, i32) {
    %c0_i32 = arith.constant 0 : i32
    %c0_i32_0 = arith.constant 0 : i32
    %c0_i32_1 = arith.constant 0 : i32
    return %c0_i32, %c0_i32_0 : i32, i32
  }
  func.func @transform_4(%arg0: i32, %arg1: i32) -> (i32, i32) {
    %c0_i32 = arith.constant 0 : i32
    %c0_i32_0 = arith.constant 0 : i32
    %c0_i32_1 = arith.constant 0 : i32
    return %c0_i32, %c0_i32_0 : i32, i32
  }
  func.func @transform_5(%arg0: i32, %arg1: i32) -> (i32, i32) {
    %c0_i32 = arith.constant 0 : i32
    %c0_i32_0 = arith.constant 0 : i32
    return %arg0, %c0_i32 : i32, i32
  }
}

</mosaic_0001>

<llo_original>
// kernel: tpu_custom_call.1
$region0: #{tpu_custom_call.1}
  #allocation0 [shape = 'u32[]', space=smem, size = 0x4, offset = 0x4, fixed_abs, tag = 'smem constant byte address 0x4 - core index']
  #allocation1 [shape = 'u32[72,128]{1,0:T(1,128)}', space=vmem, size = 0x9000, scoped, tag = 'internal scratch']
  #allocation2 [shape = 'f32[64,256]{1,0:T(8,128)}', space=vmem, size = 0x10000, scoped, tag = 'scratch operand']
  %s0 = inlined_call_operand.hbm [shape: bf16[192,384], index: 0, kind: input, shape index: {}]
  %s1 = inlined_call_operand.hbm [shape: bf16[384,128], index: 1, kind: input, shape index: {}]
  %s2 = inlined_call_operand.hbm [shape: bf16[192,128], index: 2, kind: input, shape index: {}]
  %s3 = inlined_call_operand.hbm [shape: bf16[256,128], index: 3, kind: input, shape index: {}]
  %s4 = inlined_call_operand.vmem [shape: f32[1,128], index: 4, kind: input, shape index: {}]
  %s5 = inlined_call_operand.hbm [shape: bf16[192,128], index: 5, kind: output, shape index: {}]
  %s6 = sld [smem:[#allocation0]]
  $region77: #{tpu_custom_call.1} parent=0
    _
  %s8 = ssub.s32 1, %s6
  %s9 = scalar_select 0, %s8, %s6
  $region1: #{tpu_custom_call.1} parent=0
    #allocation3 [shape = 'u8[32768]{0}', space=vmem, size = 0x8000, scoped, tag = 'input window, operand 0']
    #allocation4 [shape = 's32[2]{0}', space=sflag, size = 0x8, scoped, tag = 'scoped memory for tpu_custom_call.1']
    #allocation5 [shape = 's32[2]{0}', space=sflag, size = 0x8, scoped, tag = 'scoped memory for tpu_custom_call.1']
    #allocation6 [shape = 'u8[65536]{0}', space=vmem, size = 0x10000, scoped, tag = 'input window, operand 1']
    #allocation7 [shape = 's32[2]{0}', space=sflag, size = 0x8, scoped, tag = 'scoped memory for tpu_custom_call.1']
    #allocation8 [shape = 'u8[32768]{0}', space=vmem, size = 0x8000, scoped, tag = 'input window, operand 2']
    #allocation9 [shape = 'u8[65536]{0}', space=vmem, size = 0x10000, scoped, tag = 'input window, operand 3, single buffered']
    #allocation10 [shape = 's32[1]{0}', space=sflag, size = 0x4, scoped, tag = 'scoped memory for tpu_custom_call.1']
    #allocation11 [shape = 'u8[32768]{0}', space=vmem, size = 0x8000, scoped, tag = 'output window, operand 0']
    %10 = vsyncpa [#allocation4], 0
    %s11 = scalar_lea.sflag [#allocation4], 1
    %12 = vsyncpa %s11, 0
    %13 = vsyncpa [#allocation7], 0
    %s14 = scalar_lea.sflag [#allocation7], 1
    %15 = vsyncpa %s14, 0
    %16 = vsyncpa [#allocation10], 0
    %17 = vsyncpa [#allocation5], 0
    %s18 = scalar_lea.sflag [#allocation5], 1
    %19 = vsyncpa %s18, 0
    loop: start=0, step=1, limit=11
    $region2: #{tpu_custom_call.1} parent=1 // loop_pre_header
      _
    $region3: #{tpu_custom_call.1} parent=1 // loop_header
      %s21 = sphi 0, %s25
      %p22 = scmp.ge.s32.totalorder %s21, 11
      %s28 = sphi 0, %s40
      %s29 = sphi 0, %s36
      %s30 = sphi 0, %s28
      %s31 = sphi 0, %s29
      %s32 = sphi 0, %s30
      %s33 = sphi 0, %s31
      %s45 = sphi 0, %s47
      %s48 = sphi 0, %s45
      %s49 = sphi 0, %s48
      %s65 = sphi 0, %s49
      %s71 = sphi 0, %s73
      %s74 = sphi 0, %s71
      %s75 = sphi 0, %s74
      %s91 = sphi 0, %s75
      %s97 = sphi 0, %s99
      %s100 = sphi 0, %s97
      %s101 = sphi 0, %s100
      %s117 = sphi 0, %s101
      %s121 = sphi 0, %s121
      %s123 = sphi 0, %s121
      %s124 = sphi 0, %s123
      %s138 = sphi 0, %s124
      %s142 = sphi 0, %s142
      %s144 = sphi 0, %s142
      %s145 = sphi 0, %s144
      %s159 = sphi 0, %s145
      %s165 = sphi 0, %s167
      %s168 = sphi 0, %s165
      %s169 = sphi 0, %s168
      %s185 = sphi 0, %s169
    $region4: #{tpu_custom_call.1} parent=1 // loop_header_branch
      %24 = sbr.rel (%p22) target = $region8
    $region5: #{tpu_custom_call.1} parent=1 // loop_body
      %s26 = ssub.s32 %s21, 1
      %s27 = ssub.s32 %s21, 2
      %s34 = sadd.s32 1, %s29
      %p35 = scmp.ge.s32.totalorder %s34, 3
      %s36 = scalar_select %p35, 0, %s34
      %s37 = sadd.s32 1, %s28
      %s38 = scalar_select %p35, %s37, %s28
      %p39 = scmp.ge.s32.totalorder %s38, 3
      %s40 = scalar_select %p39, 0, %s38
      %s41 = ssub.s32 %s28, %s40
      %s42 = ssub.s32 %s29, %s36
      %s43 = sor.u32 %s41, %s42
      %p44 = scmp.eq.s32.totalorder %s43, 0
      %s46 = sadd.s32 %s45, 1
      %s47 = scalar_select %p44, %s45, %s46
      %p50 = pneg %p44
      %p51 = scmp.eq.s32.totalorder %s21, 8
      %p52 = por %p50, %p51
      %p53 = scmp.ne.s32.totalorder %s45, %s48
      %p54 = scmp.eq.s32.totalorder %s21, 0
      %p55 = por %p53, %p54
      %p56 = scmp.ne.s32.totalorder %s45, %s48
      %p57 = scmp.eq.s32.totalorder %s26, 8
      %p58 = por %p56, %p57
      %p59 = scmp.ne.s32.totalorder %s48, %s49
      %p60 = scmp.eq.s32.totalorder %s26, 0
      %p61 = por %p59, %p60
      %p62 = scmp.ne.s32.totalorder %s48, %s49
      %p63 = scmp.eq.s32.totalorder %s27, 8
      %p64 = por %p62, %p63
      %p66 = scmp.ne.s32.totalorder %s49, %s65
      %p67 = scmp.eq.s32.totalorder %s27, 0
      %p68 = por %p66, %p67
      %s69 = ssub.s32 %s29, %s36
      %p70 = scmp.eq.s32.totalorder %s69, 0
      %s72 = sadd.s32 %s71, 1
      %s73 = scalar_select %p70, %s71, %s72
      %p76 = pneg %p70
      %p77 = scmp.eq.s32.totalorder %s21, 8
      %p78 = por %p76, %p77
      %p79 = scmp.ne.s32.totalorder %s71, %s74
      %p80 = scmp.eq.s32.totalorder %s21, 0
      %p81 = por %p79, %p80
      %p82 = scmp.ne.s32.totalorder %s71, %s74
      %p83 = scmp.eq.s32.totalorder %s26, 8
      %p84 = por %p82, %p83
      %p85 = scmp.ne.s32.totalorder %s74, %s75
      %p86 = scmp.eq.s32.totalorder %s26, 0
      %p87 = por %p85, %p86
      %p88 = scmp.ne.s32.totalorder %s74, %s75
      %p89 = scmp.eq.s32.totalorder %s27, 8
      %p90 = por %p88, %p89
      %p92 = scmp.ne.s32.totalorder %s75, %s91
      %p93 = scmp.eq.s32.totalorder %s27, 0
      %p94 = por %p92, %p93
      %s95 = ssub.s32 %s28, %s40
      %p96 = scmp.eq.s32.totalorder %s95, 0
      %s98 = sadd.s32 %s97, 1
      %s99 = scalar_select %p96, %s97, %s98
      %p102 = pneg %p96
      %p103 = scmp.eq.s32.totalorder %s21, 8
      %p104 = por %p102, %p103
      %p105 = scmp.ne.s32.totalorder %s97, %s100
      %p106 = scmp.eq.s32.totalorder %s21, 0
      %p107 = por %p105, %p106
      %p108 = scmp.ne.s32.totalorder %s97, %s100
      %p109 = scmp.eq.s32.totalorder %s26, 8
      %p110 = por %p108, %p109
      %p111 = scmp.ne.s32.totalorder %s100, %s101
      %p112 = scmp.eq.s32.totalorder %s26, 0
      %p113 = por %p111, %p112
      %p114 = scmp.ne.s32.totalorder %s100, %s101
      %p115 = scmp.eq.s32.totalorder %s27, 8
      %p116 = por %p114, %p115
      %p118 = scmp.ne.s32.totalorder %s101, %s117
      %p119 = scmp.eq.s32.totalorder %s27, 0
      %p120 = por %p118, %p119
      %s122 = sadd.s32 %s121, 1
      %p125 = scmp.eq.s32.totalorder %s21, 8
      %p126 = scmp.ne.s32.totalorder %s121, %s123
      %p127 = scmp.eq.s32.totalorder %s21, 0
      %p128 = por %p126, %p127
      %p129 = scmp.ne.s32.totalorder %s121, %s123
      %p130 = scmp.eq.s32.totalorder %s26, 8
      %p131 = por %p129, %p130
      %p132 = scmp.ne.s32.totalorder %s123, %s124
      %p133 = scmp.eq.s32.totalorder %s26, 0
      %p134 = por %p132, %p133
      %p135 = scmp.ne.s32.totalorder %s123, %s124
      %p136 = scmp.eq.s32.totalorder %s27, 8
      %p137 = por %p135, %p136
      %p139 = scmp.ne.s32.totalorder %s124, %s138
      %p140 = scmp.eq.s32.totalorder %s27, 0
      %p141 = por %p139, %p140
      %s143 = sadd.s32 %s142, 1
      %p146 = scmp.eq.s32.totalorder %s21, 8
      %p147 = scmp.ne.s32.totalorder %s142, %s144
      %p148 = scmp.eq.s32.totalorder %s21, 0
      %p149 = por %p147, %p148
      %p150 = scmp.ne.s32.totalorder %s142, %s144
      %p151 = scmp.eq.s32.totalorder %s26, 8
      %p152 = por %p150, %p151
      %p153 = scmp.ne.s32.totalorder %s144, %s145
      %p154 = scmp.eq.s32.totalorder %s26, 0
      %p155 = por %p153, %p154
      %p156 = scmp.ne.s32.totalorder %s144, %s145
      %p157 = scmp.eq.s32.totalorder %s27, 8
      %p158 = por %p156, %p157
      %p160 = scmp.ne.s32.totalorder %s145, %s159
      %p161 = scmp.eq.s32.totalorder %s27, 0
      %p162 = por %p160, %p161
      %s163 = ssub.s32 %s28, %s40
      %p164 = scmp.eq.s32.totalorder %s163, 0
      %s166 = sadd.s32 %s165, 1
      %s167 = scalar_select %p164, %s165, %s166
      %p170 = pneg %p164
      %p171 = scmp.eq.s32.totalorder %s21, 8
      %p172 = por %p170, %p171
      %p173 = scmp.ne.s32.totalorder %s165, %s168
      %p174 = scmp.eq.s32.totalorder %s21, 0
      %p175 = por %p173, %p174
      %p176 = scmp.ne.s32.totalorder %s165, %s168
      %p177 = scmp.eq.s32.totalorder %s26, 8
      %p178 = por %p176, %p177
      %p179 = scmp.ne.s32.totalorder %s168, %s169
      %p180 = scmp.eq.s32.totalorder %s26, 0
      %p181 = por %p179, %p180
      %p182 = scmp.ne.s32.totalorder %s168, %s169
      %p183 = scmp.eq.s32.totalorder %s27, 8
      %p184 = por %p182, %p183
      %p186 = scmp.ne.s32.totalorder %s169, %s185
      %p187 = scmp.eq.s32.totalorder %s27, 0
      %p188 = por %p186, %p187
      %p189 = scmp.le.s32.totalorder 1, %s21
      %p190 = scmp.lt.s32.totalorder %s21, 10
      %p191 = pnand %p189, %p190
      %p192 = pneg %p191
      // Predicated region
      $region9: #{tpu_custom_call.1} parent=5 // pred_check
        _
      $region10: #{tpu_custom_call.1} parent=5 // pred_check_branch
        %194 = sbr.rel (%p191) target = $region12
      $region11: #{tpu_custom_call.1} parent=5 // pred_region
        %s195 = ssub.s32 %s21, 1
        // Predicated region
        $region13: #{tpu_custom_call.1} parent=11 // pred_check
          %p196 = pneg %p134
        $region14: #{tpu_custom_call.1} parent=11 // pred_check_branch
          %198 = sbr.rel (%p196) target = $region16
        $region15: #{tpu_custom_call.1} parent=11 // pred_region
          %200 = vsyncadd [#allocation10], 0
          %s201 = sshll.u32 %s3, 4
          %s202 = int_to_ptr.hbm [resolvable:$true] %s201
          %s203 = sshll.u32 [#allocation9], 4
          %s204 = int_to_ptr.vmem [resolvable:$true] %s203
          %209 = dma.hbm_to_vmem [thread:$0]  %s202, 2048, %s204, [#allocation10], 64, 64, 4
        $region16: #{tpu_custom_call.1} parent=11 // pred_fallthru
          _
        // Predicated region
        $region17: #{tpu_custom_call.1} parent=11 // pred_check
          %p210 = pneg %p155
        $region18: #{tpu_custom_call.1} parent=11 // pred_check_branch
          %212 = sbr.rel (%p210) target = $region20
        $region19: #{tpu_custom_call.1} parent=11 // pred_region
          _
        $region20: #{tpu_custom_call.1} parent=11 // pred_fallthru
          _
      $region12: #{tpu_custom_call.1} parent=5 // pred_fallthru
        _
      %p213 = scmp.lt.s32.totalorder %s21, 9
      // Predicated region
      $region21: #{tpu_custom_call.1} parent=5 // pred_check
        %p214 = pneg %p213
      $region22: #{tpu_custom_call.1} parent=5 // pred_check_branch
        %216 = sbr.rel (%p214) target = $region24
      $region23: #{tpu_custom_call.1} parent=5 // pred_region
        // Predicated region
        $region25: #{tpu_custom_call.1} parent=23 // pred_check
          %p217 = pneg %p55
        $region26: #{tpu_custom_call.1} parent=23 // pred_check_branch
          %219 = sbr.rel (%p217) target = $region28
        $region27: #{tpu_custom_call.1} parent=23 // pred_region
          %s220 = sand.u32 %s45, 1
          %s221 = scalar_lea.sflag [#allocation4], %s220
          %s222 = sand.u32 %s45, 1
          %s223 = smul.addr %s222, 32
          %s224 = scalar_lea.vmem [#allocation3], %s223
          %s225 = smul.u32 8, %s28
          %227 = vsyncadd %s221, 0
          %s228 = smul.addr %s225, 3
          %s229 = sadd.s32 %s29, %s228
          %s230 = smul.addr %s229, 4
          %s231 = scalar_lea.hbm %s0, %s230
          %s232 = sshll.u32 %s231, 4
          %s233 = int_to_ptr.hbm [resolvable:$true] %s232
          %s234 = sshll.u32 %s224, 4
          %s235 = int_to_ptr.vmem [resolvable:$true] %s234
          %240 = dma.hbm_to_vmem [thread:$0]  %s233, 512, %s235, %s221, 192, 64, 4
        $region28: #{tpu_custom_call.1} parent=23 // pred_fallthru
          _
        // Predicated region
        $region29: #{tpu_custom_call.1} parent=23 // pred_check
          %p241 = pneg %p81
        $region30: #{tpu_custom_call.1} parent=23 // pred_check_branch
          %243 = sbr.rel (%p241) target = $region32
        $region31: #{tpu_custom_call.1} parent=23 // pred_region
          %s244 = sand.u32 %s21, 1
          %s245 = scalar_lea.sflag [#allocation7], %s244
          %s246 = sand.u32 %s71, 1
          %s247 = smul.addr %s246, 64
          %s248 = scalar_lea.vmem [#allocation6], %s247
          %s249 = smul.u32 16, %s29
          %251 = vsyncadd %s245, 0
          %s252 = smul.addr %s249, 4
          %s253 = scalar_lea.hbm %s1, %s252
          %s254 = sshll.u32 %s253, 4
          %s255 = int_to_ptr.hbm [resolvable:$true] %s254
          %s256 = sshll.u32 %s248, 4
          %s257 = int_to_ptr.vmem [resolvable:$true] %s256
          %262 = dma.hbm_to_vmem [thread:$0]  %s255, 1024, %s257, %s245, 64, 64, 4
        $region32: #{tpu_custom_call.1} parent=23 // pred_fallthru
          _
        // Predicated region
        $region33: #{tpu_custom_call.1} parent=23 // pred_check
          %p263 = pneg %p107
        $region34: #{tpu_custom_call.1} parent=23 // pred_check_branch
          %265 = sbr.rel (%p263) target = $region36
        $region35: #{tpu_custom_call.1} parent=23 // pred_region
          %s266 = sand.u32 %s21, 1
          %s267 = scalar_lea.sflag [#allocation7], %s266
          %s268 = sand.u32 %s97, 1
          %s269 = smul.addr %s268, 32
          %s270 = scalar_lea.vmem [#allocation8], %s269
          %s271 = smul.u32 8, %s28
          %273 = vsyncadd %s267, 0
          %s274 = smul.addr %s271, 4
          %s275 = scalar_lea.hbm %s2, %s274
          %s276 = sshll.u32 %s275, 4
          %s277 = int_to_ptr.hbm [resolvable:$true] %s276
          %s278 = sshll.u32 %s270, 4
          %s279 = int_to_ptr.vmem [resolvable:$true] %s278
          %284 = dma.hbm_to_vmem [thread:$0]  %s277, 512, %s279, %s267, 64, 64, 4
        $region36: #{tpu_custom_call.1} parent=23 // pred_fallthru
          _
      $region24: #{tpu_custom_call.1} parent=5 // pred_fallthru
        _
      %p285 = scmp.le.s32.totalorder 1, %s21
      %p286 = scmp.lt.s32.totalorder %s21, 10
      %p287 = pnand %p285, %p286
      %p288 = pneg %p287
      // Predicated region
      $region37: #{tpu_custom_call.1} parent=5 // pred_check
        _
      $region38: #{tpu_custom_call.1} parent=5 // pred_check_branch
        %290 = sbr.rel (%p287) target = $region40
      $region39: #{tpu_custom_call.1} parent=5 // pred_region
        %s291 = ssub.s32 %s21, 1
        %s292 = sand.u32 %s48, 1
        %s293 = scalar_lea.sflag [#allocation4], %s292
        %s294 = sand.u32 %s48, 1
        %s295 = smul.addr %s294, 32
        %s296 = scalar_lea.vmem [#allocation3], %s295
        // Predicated region
        $region41: #{tpu_custom_call.1} parent=39 // pred_check
          %p297 = pneg %p61
        $region42: #{tpu_custom_call.1} parent=39 // pred_check_branch
          %299 = sbr.rel (%p297) target = $region44
        $region43: #{tpu_custom_call.1} parent=39 // pred_region
          %301 = dma.done %s293, 512
        $region44: #{tpu_custom_call.1} parent=39 // pred_fallthru
          _
        %s302 = sand.u32 %s26, 1
        %s303 = scalar_lea.sflag [#allocation7], %s302
        %s304 = sand.u32 %s74, 1
        %s305 = smul.addr %s304, 64
        %s306 = scalar_lea.vmem [#allocation6], %s305
        // Predicated region
        $region45: #{tpu_custom_call.1} parent=39 // pred_check
          %p307 = pneg %p87
        $region46: #{tpu_custom_call.1} parent=39 // pred_check_branch
          %309 = sbr.rel (%p307) target = $region48
        $region47: #{tpu_custom_call.1} parent=39 // pred_region
          %311 = dma.done %s303, 1024
        $region48: #{tpu_custom_call.1} parent=39 // pred_fallthru
          _
        %s312 = sand.u32 %s26, 1
        %s313 = scalar_lea.sflag [#allocation7], %s312
        %s314 = sand.u32 %s100, 1
        %s315 = smul.addr %s314, 32
        %s316 = scalar_lea.vmem [#allocation8], %s315
        // Predicated region
        $region49: #{tpu_custom_call.1} parent=39 // pred_check
          %p317 = pneg %p113
        $region50: #{tpu_custom_call.1} parent=39 // pred_check_branch
          %319 = sbr.rel (%p317) target = $region52
        $region51: #{tpu_custom_call.1} parent=39 // pred_region
          %321 = dma.done %s313, 512
        $region52: #{tpu_custom_call.1} parent=39 // pred_fallthru
          _
        // Predicated region
        $region53: #{tpu_custom_call.1} parent=39 // pred_check
          %p322 = pneg %p134
        $region54: #{tpu_custom_call.1} parent=39 // pred_check_branch
          %324 = sbr.rel (%p322) target = $region56
        $region55: #{tpu_custom_call.1} parent=39 // pred_region
          %326 = dma.done [#allocation10], 2048
        $region56: #{tpu_custom_call.1} parent=39 // pred_fallthru
          _
        %s327 = sand.u32 %s48, 1
        %s328 = scalar_lea.sflag [#allocation4], %s327
        %s329 = sand.u32 %s48, 1
        %s330 = smul.addr %s329, 32
        %s331 = scalar_lea.vmem [#allocation3], %s330
        %p332 = pneg %p61
        %p333 = pneg %p58
        %s334 = sand.u32 %s26, 1
        %s335 = scalar_lea.sflag [#allocation7], %s334
        %s336 = sand.u32 %s74, 1
        %s337 = smul.addr %s336, 64
        %s338 = scalar_lea.vmem [#allocation6], %s337
        %p339 = pneg %p87
        %p340 = pneg %p84
        %s341 = sand.u32 %s26, 1
        %s342 = scalar_lea.sflag [#allocation7], %s341
        %s343 = sand.u32 %s100, 1
        %s344 = smul.addr %s343, 32
        %s345 = scalar_lea.vmem [#allocation8], %s344
        %p346 = pneg %p113
        %p347 = pneg %p110
        %p348 = pneg %p134
        %p349 = pneg %p131
        %p350 = pneg %p155
        %p351 = pneg %p152
        %p352 = pneg %p181
        %p353 = pneg %p178
        %s354 = sand.u32 %s168, 1
        %s355 = scalar_lea.sflag [#allocation5], %s354
        %s356 = sand.u32 %s168, 1
        %s357 = smul.addr %s356, 32
        %s358 = scalar_lea.vmem [#allocation11], %s357
        %s359 = smul.u32 8, %s30
        %s360 = smul.u32 16, %s31
        %s361 = smul.u32 8, %s30
        %s362 = smul.u32 8, %s30
        %p363 = scmp.eq.s32.totalorder %s31, 0
        // Predicated region
        $region57: #{tpu_custom_call.1} parent=39 // pred_check
          %p364 = pneg %p363
        $region58: #{tpu_custom_call.1} parent=39 // pred_check_branch
          %366 = sbr.rel (%p364) target = $region60
        $region59: #{tpu_custom_call.1} parent=39 // pred_region
          %v367 = vld [vmem:[%s316] sm:$0xf]
          %v368 = vld [vmem:[%s316 + $0x4] sm:$0xf]
          %v369 = vld [vmem:[%s316 + $0x8] sm:$0xf]
          %v370 = vld [vmem:[%s316 + $0xc] sm:$0xf]
          %v371 = vld [vmem:[%s316 + $0x10] sm:$0xf]
          %v372 = vld [vmem:[%s316 + $0x14] sm:$0xf]
          %v373 = vld [vmem:[%s316 + $0x18] sm:$0xf]
          %v374 = vld [vmem:[%s316 + $0x1c] sm:$0xf]
          %v375 = vunpack.c.l.bf16 %v367
          %v376 = vunpack.c.l.bf16 %v368
          %v377 = vunpack.c.l.bf16 %v369
          %v378 = vunpack.c.l.bf16 %v370
          %v379 = vunpack.c.l.bf16 %v371
          %v380 = vunpack.c.l.bf16 %v372
          %v381 = vunpack.c.l.bf16 %v373
          %v382 = vunpack.c.l.bf16 %v374
          %383 = vst [vmem:[#allocation2] sm:$0xff] %v375
          %384 = vst [vmem:[#allocation2 + $0x10] sm:$0xff] %v376
          %385 = vst [vmem:[#allocation2 + $0x20] sm:$0xff] %v377
          %386 = vst [vmem:[#allocation2 + $0x30] sm:$0xff] %v378
          %387 = vst [vmem:[#allocation2 + $0x40] sm:$0xff] %v379
          %388 = vst [vmem:[#allocation2 + $0x50] sm:$0xff] %v380
          %389 = vst [vmem:[#allocation2 + $0x60] sm:$0xff] %v381
          %390 = vst [vmem:[#allocation2 + $0x70] sm:$0xff] %v382
          %391 = vst [vmem:[#allocation2 + $0x8] sm:$0xff] 0.0
          %392 = vst [vmem:[#allocation2 + $0x18] sm:$0xff] 0.0
          %393 = vst [vmem:[#allocation2 + $0x28] sm:$0xff] 0.0
          %394 = vst [vmem:[#allocation2 + $0x38] sm:$0xff] 0.0
          %395 = vst [vmem:[#allocation2 + $0x48] sm:$0xff] 0.0
          %396 = vst [vmem:[#allocation2 + $0x58] sm:$0xff] 0.0
          %397 = vst [vmem:[#allocation2 + $0x68] sm:$0xff] 0.0
          %398 = vst [vmem:[#allocation2 + $0x78] sm:$0xff] 0.0
        $region60: #{tpu_custom_call.1} parent=39 // pred_fallthru
          _
        %v399 = vld [vmem:[#allocation2 + $0x8] sm:$0xff]
        %v400 = vld [vmem:[#allocation2 + $0x18] sm:$0xff]
        %v401 = vld [vmem:[#allocation2 + $0x28] sm:$0xff]
        %v402 = vld [vmem:[#allocation2 + $0x38] sm:$0xff]
        %v403 = vld [vmem:[#allocation2 + $0x48] sm:$0xff]
        %v404 = vld [vmem:[#allocation2 + $0x58] sm:$0xff]
        %v405 = vld [vmem:[#allocation2 + $0x68] sm:$0xff]
        %v406 = vld [vmem:[#allocation2 + $0x78] sm:$0xff]
        %v407 = vld [vmem:[%s296] sm:$0xf]
        %v408 = vld [vmem:[%s296 + $0x4] sm:$0xf]
        %v409 = vld [vmem:[%s296 + $0x8] sm:$0xf]
        %v410 = vld [vmem:[%s296 + $0xc] sm:$0xf]
        %v411 = vld [vmem:[%s296 + $0x10] sm:$0xf]
        %v412 = vld [vmem:[%s296 + $0x14] sm:$0xf]
        %v413 = vld [vmem:[%s296 + $0x18] sm:$0xf]
        %v414 = vld [vmem:[%s296 + $0x1c] sm:$0xf]
        %v415 = vld [vmem:[%s306] sm:$0xf]
        %v416 = vld [vmem:[%s306 + $0x4] sm:$0xf]
        %v417 = vld [vmem:[%s306 + $0x8] sm:$0xf]
        %v418 = vld [vmem:[%s306 + $0xc] sm:$0xf]
        %v419 = vld [vmem:[%s306 + $0x10] sm:$0xf]
        %v420 = vld [vmem:[%s306 + $0x14] sm:$0xf]
        %v421 = vld [vmem:[%s306 + $0x18] sm:$0xf]
        %v422 = vld [vmem:[%s306 + $0x1c] sm:$0xf]
        %v423 = vld [vmem:[%s306 + $0x20] sm:$0xf]
        %v424 = vld [vmem:[%s306 + $0x24] sm:$0xf]
        %v425 = vld [vmem:[%s306 + $0x28] sm:$0xf]
        %v426 = vld [vmem:[%s306 + $0x2c] sm:$0xf]
        %v427 = vld [vmem:[%s306 + $0x30] sm:$0xf]
        %v428 = vld [vmem:[%s306 + $0x34] sm:$0xf]
        %v429 = vld [vmem:[%s306 + $0x38] sm:$0xf]
        %v430 = vld [vmem:[%s306 + $0x3c] sm:$0xf]
        %v439 = vunpack.c.l.b16 %v407
        %v440 = vunpack.c.l.b16 %v408
        %v441 = vunpack.c.l.b16 %v409
        %v442 = vunpack.c.l.b16 %v410
        %v443 = vunpack.c.l.b16 %v411
        %v444 = vunpack.c.l.b16 %v412
        %v445 = vunpack.c.l.b16 %v413
        %v446 = vunpack.c.l.b16 %v414
        %v447 = vpack.c.b16 %v440, %v439
        %v448 = vpack.c.b16 %v442, %v441
        %v449 = vpack.c.b16 %v444, %v443
        %v450 = vpack.c.b16 %v446, %v445
        %v471 = vunpack.c.l.b16 %v415
        %v472 = vunpack.c.l.b16 %v416
        %v473 = vunpack.c.l.b16 %v417
        %v474 = vunpack.c.l.b16 %v418
        %v475 = vunpack.c.l.b16 %v419
        %v476 = vunpack.c.l.b16 %v420
        %v477 = vunpack.c.l.b16 %v421
        %v478 = vunpack.c.l.b16 %v422
        %v479 = vunpack.c.l.b16 %v423
        %v480 = vunpack.c.l.b16 %v424
        %v481 = vunpack.c.l.b16 %v425
        %v482 = vunpack.c.l.b16 %v426
        %v483 = vunpack.c.l.b16 %v427
        %v484 = vunpack.c.l.b16 %v428
        %v485 = vunpack.c.l.b16 %v429
        %v486 = vunpack.c.l.b16 %v430
        %v487 = vpack.c.b16 %v472, %v471
        %v488 = vpack.c.b16 %v474, %v473
        %v489 = vpack.c.b16 %v476, %v475
        %v490 = vpack.c.b16 %v478, %v477
        %v491 = vpack.c.b16 %v480, %v479
        %v492 = vpack.c.b16 %v482, %v481
        %v493 = vpack.c.b16 %v484, %v483
        %v494 = vpack.c.b16 %v486, %v485
        %503 = vmatpush.bf16.msra.mxu0 %v494
        %504 = vmatpush.bf16.msra.mxu0 %v493
        %505 = vmatpush.bf16.msra.mxu0 %v492
        %506 = vmatpush.bf16.msra.mxu0 %v491
        %507 = vmatpush.bf16.msra.mxu0 %v490
        %508 = vmatpush.bf16.msra.mxu0 %v489
        %509 = vmatpush.bf16.msra.mxu0 %v488
        %510 = vmatpush.bf16.msra.mxu0 %v487
        %511 = vmatmul.bf16.gmra.mxu0 %v447
        %v512 = vpop.f32.mrf.mxu0
        %v513 = vadd.f32 0.0, %v512
        %v514 = vpop.f32.mrf.mxu0
        %v515 = vadd.f32 0.0, %v514
        %516 = vmatmul.bf16.gmra.mxu0 %v448
        %v517 = vpop.f32.mrf.mxu0
        %v518 = vadd.f32 0.0, %v517
        %v519 = vpop.f32.mrf.mxu0
        %v520 = vadd.f32 0.0, %v519
        %521 = vmatmul.bf16.gmra.mxu0 %v449
        %v522 = vpop.f32.mrf.mxu0
        %v523 = vadd.f32 0.0, %v522
        %v524 = vpop.f32.mrf.mxu0
        %v525 = vadd.f32 0.0, %v524
        %526 = vmatmul.bf16.gmra.mxu0 %v450
        %v527 = vpop.f32.mrf.mxu0
        %v528 = vadd.f32 0.0, %v527
        %v529 = vpop.f32.mrf.mxu0
        %v530 = vadd.f32 0.0, %v529
        %531 = vdwg.mxu0
        %v532 = vadd.f32 %v399, %v513
        %v533 = vadd.f32 %v400, %v515
        %v534 = vadd.f32 %v401, %v518
        %v535 = vadd.f32 %v402, %v520
        %v536 = vadd.f32 %v403, %v523
        %v537 = vadd.f32 %v404, %v525
        %v538 = vadd.f32 %v405, %v528
        %v539 = vadd.f32 %v406, %v530
        %540 = vst [vmem:[#allocation2 + $0x8] sm:$0xff] %v532
        %541 = vst [vmem:[#allocation2 + $0x18] sm:$0xff] %v533
        %542 = vst [vmem:[#allocation2 + $0x28] sm:$0xff] %v534
        %543 = vst [vmem:[#allocation2 + $0x38] sm:$0xff] %v535
        %544 = vst [vmem:[#allocation2 + $0x48] sm:$0xff] %v536
        %545 = vst [vmem:[#allocation2 + $0x58] sm:$0xff] %v537
        %546 = vst [vmem:[#allocation2 + $0x68] sm:$0xff] %v538
        %547 = vst [vmem:[#allocation2 + $0x78] sm:$0xff] %v539
        %p548 = scmp.eq.s32.totalorder %s31, 2
        // Predicated region
        $region61: #{tpu_custom_call.1} parent=39 // pred_check
          %p549 = pneg %p548
        $region62: #{tpu_custom_call.1} parent=39 // pred_check_branch
          %551 = sbr.rel (%p549) target = $region64
        $region63: #{tpu_custom_call.1} parent=39 // pred_region
          %v552 = vld [vmem:[#allocation2] sm:$0xff]
          %v553 = vld [vmem:[#allocation2 + $0x8] sm:$0xff]
          %v554 = vld [vmem:[#allocation2 + $0x10] sm:$0xff]
          %v555 = vld [vmem:[#allocation2 + $0x18] sm:$0xff]
          %v556 = vld [vmem:[#allocation2 + $0x20] sm:$0xff]
          %v557 = vld [vmem:[#allocation2 + $0x28] sm:$0xff]
          %v558 = vld [vmem:[#allocation2 + $0x30] sm:$0xff]
          %v559 = vld [vmem:[#allocation2 + $0x38] sm:$0xff]
          %v560 = vld [vmem:[#allocation2 + $0x40] sm:$0xff]
          %v561 = vld [vmem:[#allocation2 + $0x48] sm:$0xff]
          %v562 = vld [vmem:[#allocation2 + $0x50] sm:$0xff]
          %v563 = vld [vmem:[#allocation2 + $0x58] sm:$0xff]
          %v564 = vld [vmem:[#allocation2 + $0x60] sm:$0xff]
          %v565 = vld [vmem:[#allocation2 + $0x68] sm:$0xff]
          %v566 = vld [vmem:[#allocation2 + $0x70] sm:$0xff]
          %v567 = vld [vmem:[#allocation2 + $0x78] sm:$0xff]
          %v568 = vpack.c.bf16 %v554, %v552
          %v569 = vpack.c.bf16 %v555, %v553
          %v570 = vpack.c.bf16 %v558, %v556
          %v571 = vpack.c.bf16 %v559, %v557
          %v572 = vpack.c.bf16 %v562, %v560
          %v573 = vpack.c.bf16 %v563, %v561
          %v574 = vpack.c.bf16 %v566, %v564
          %v575 = vpack.c.bf16 %v567, %v565
          %v576 = vld [vmem:[#allocation9] sm:$0xf]
          %v577 = vld [vmem:[#allocation9 + $0x4] sm:$0xf]
          %v578 = vld [vmem:[#allocation9 + $0x8] sm:$0xf]
          %v579 = vld [vmem:[#allocation9 + $0xc] sm:$0xf]
          %v580 = vld [vmem:[#allocation9 + $0x10] sm:$0xf]
          %v581 = vld [vmem:[#allocation9 + $0x14] sm:$0xf]
          %v582 = vld [vmem:[#allocation9 + $0x18] sm:$0xf]
          %v583 = vld [vmem:[#allocation9 + $0x1c] sm:$0xf]
          %v584 = vld [vmem:[#allocation9 + $0x20] sm:$0xf]
          %v585 = vld [vmem:[#allocation9 + $0x24] sm:$0xf]
          %v586 = vld [vmem:[#allocation9 + $0x28] sm:$0xf]
          %v587 = vld [vmem:[#allocation9 + $0x2c] sm:$0xf]
          %v588 = vld [vmem:[#allocation9 + $0x30] sm:$0xf]
          %v589 = vld [vmem:[#allocation9 + $0x34] sm:$0xf]
          %v590 = vld [vmem:[#allocation9 + $0x38] sm:$0xf]
          %v591 = vld [vmem:[#allocation9 + $0x3c] sm:$0xf]
          %v592 = vld [vmem:[#allocation9 + $0x40] sm:$0xf]
          %v593 = vld [vmem:[#allocation9 + $0x44] sm:$0xf]
          %v594 = vld [vmem:[#allocation9 + $0x48] sm:$0xf]
          %v595 = vld [vmem:[#allocation9 + $0x4c] sm:$0xf]
          %v596 = vld [vmem:[#allocation9 + $0x50] sm:$0xf]
          %v597 = vld [vmem:[#allocation9 + $0x54] sm:$0xf]
          %v598 = vld [vmem:[#allocation9 + $0x58] sm:$0xf]
          %v599 = vld [vmem:[#allocation9 + $0x5c] sm:$0xf]
          %v600 = vld [vmem:[#allocation9 + $0x60] sm:$0xf]
          %v601 = vld [vmem:[#allocation9 + $0x64] sm:$0xf]
          %v602 = vld [vmem:[#allocation9 + $0x68] sm:$0xf]
          %v603 = vld [vmem:[#allocation9 + $0x6c] sm:$0xf]
          %v604 = vld [vmem:[#allocation9 + $0x70] sm:$0xf]
          %v605 = vld [vmem:[#allocation9 + $0x74] sm:$0xf]
          %v606 = vld [vmem:[#allocation9 + $0x78] sm:$0xf]
          %v607 = vld [vmem:[#allocation9 + $0x7c] sm:$0xf]
          %v608 = vld [vmem:[%s4] sm:$0x1]
          %v610 = vperm.slane %v608, 0
          %v644 = vunpack.c.l.b16 %v576
          %v645 = vunpack.c.l.b16 %v577
          %v646 = vunpack.c.l.b16 %v578
          %v647 = vunpack.c.l.b16 %v579
          %v648 = vunpack.c.l.b16 %v580
          %v649 = vunpack.c.l.b16 %v581
          %v650 = vunpack.c.l.b16 %v582
          %v651 = vunpack.c.l.b16 %v583
          %v652 = vunpack.c.l.b16 %v584
          %v653 = vunpack.c.l.b16 %v585
          %v654 = vunpack.c.l.b16 %v586
          %v655 = vunpack.c.l.b16 %v587
          %v656 = vunpack.c.l.b16 %v588
          %v657 = vunpack.c.l.b16 %v589
          %v658 = vunpack.c.l.b16 %v590
          %v659 = vunpack.c.l.b16 %v591
          %v660 = vunpack.c.l.b16 %v592
          %v661 = vunpack.c.l.b16 %v593
          %v662 = vunpack.c.l.b16 %v594
          %v663 = vunpack.c.l.b16 %v595
          %v664 = vunpack.c.l.b16 %v596
          %v665 = vunpack.c.l.b16 %v597
          %v666 = vunpack.c.l.b16 %v598
          %v667 = vunpack.c.l.b16 %v599
          %v668 = vunpack.c.l.b16 %v600
          %v669 = vunpack.c.l.b16 %v601
          %v670 = vunpack.c.l.b16 %v602
          %v671 = vunpack.c.l.b16 %v603
          %v672 = vunpack.c.l.b16 %v604
          %v673 = vunpack.c.l.b16 %v605
          %v674 = vunpack.c.l.b16 %v606
          %v675 = vunpack.c.l.b16 %v607
          %v676 = vpack.c.b16 %v645, %v644
          %v677 = vpack.c.b16 %v647, %v646
          %v678 = vpack.c.b16 %v649, %v648
          %v679 = vpack.c.b16 %v651, %v650
          %v680 = vpack.c.b16 %v653, %v652
          %v681 = vpack.c.b16 %v655, %v654
          %v682 = vpack.c.b16 %v657, %v656
          %v683 = vpack.c.b16 %v659, %v658
          %v684 = vpack.c.b16 %v661, %v660
          %v685 = vpack.c.b16 %v663, %v662
          %v686 = vpack.c.b16 %v665, %v664
          %v687 = vpack.c.b16 %v667, %v666
          %v688 = vpack.c.b16 %v669, %v668
          %v689 = vpack.c.b16 %v671, %v670
          %v690 = vpack.c.b16 %v673, %v672
          %v691 = vpack.c.b16 %v675, %v674
          %708 = vmatpush.bf16.msra.mxu0 %v683
          %709 = vmatpush.bf16.msra.mxu0 %v682
          %710 = vmatpush.bf16.msra.mxu0 %v681
          %711 = vmatpush.bf16.msra.mxu0 %v680
          %712 = vmatpush.bf16.msra.mxu0 %v679
          %713 = vmatpush.bf16.msra.mxu0 %v678
          %714 = vmatpush.bf16.msra.mxu0 %v677
          %715 = vmatpush.bf16.msra.mxu0 %v676
          %716 = vmatmul.bf16.gmra.mxu0 %v568
          %v717 = vpop.f32.mrf.mxu0
          %v718 = vadd.f32 %v610, %v717
          %v719 = vpop.f32.mrf.mxu0
          %v720 = vadd.f32 %v610, %v719
          %721 = vmatmul.bf16.gmra.mxu0 %v570
          %v722 = vpop.f32.mrf.mxu0
          %v723 = vadd.f32 %v610, %v722
          %v724 = vpop.f32.mrf.mxu0
          %v725 = vadd.f32 %v610, %v724
          %726 = vmatmul.bf16.gmra.mxu0 %v572
          %v727 = vpop.f32.mrf.mxu0
          %v728 = vadd.f32 %v610, %v727
          %v729 = vpop.f32.mrf.mxu0
          %v730 = vadd.f32 %v610, %v729
          %731 = vmatmul.bf16.gmra.mxu0 %v574
          %v732 = vpop.f32.mrf.mxu0
          %v733 = vadd.f32 %v610, %v732
          %v734 = vpop.f32.mrf.mxu0
          %v735 = vadd.f32 %v610, %v734
          %736 = vdwg.mxu0
          %737 = vmatpush.bf16.msra.mxu0 %v691
          %738 = vmatpush.bf16.msra.mxu0 %v690
          %739 = vmatpush.bf16.msra.mxu0 %v689
          %740 = vmatpush.bf16.msra.mxu0 %v688
          %741 = vmatpush.bf16.msra.mxu0 %v687
          %742 = vmatpush.bf16.msra.mxu0 %v686
          %743 = vmatpush.bf16.msra.mxu0 %v685
          %744 = vmatpush.bf16.msra.mxu0 %v684
          %745 = vmatmul.bf16.gmra.mxu0 %v569
          %v746 = vpop.f32.mrf.mxu0
          %v747 = vadd.f32 %v718, %v746
          %v748 = vpop.f32.mrf.mxu0
          %v749 = vadd.f32 %v720, %v748
          %750 = vmatmul.bf16.gmra.mxu0 %v571
          %v751 = vpop.f32.mrf.mxu0
          %v752 = vadd.f32 %v723, %v751
          %v753 = vpop.f32.mrf.mxu0
          %v754 = vadd.f32 %v725, %v753
          %755 = vmatmul.bf16.gmra.mxu0 %v573
          %v756 = vpop.f32.mrf.mxu0
          %v757 = vadd.f32 %v728, %v756
          %v758 = vpop.f32.mrf.mxu0
          %v759 = vadd.f32 %v730, %v758
          %760 = vmatmul.bf16.gmra.mxu0 %v575
          %v761 = vpop.f32.mrf.mxu0
          %v762 = vadd.f32 %v733, %v761
          %v763 = vpop.f32.mrf.mxu0
          %v764 = vadd.f32 %v735, %v763
          %765 = vdwg.mxu0
          %vm766 = vcmp.gt.f32.partialorder %v747, 0.0
          %vm767 = vcmp.gt.f32.partialorder %v749, 0.0
          %vm768 = vcmp.gt.f32.partialorder %v752, 0.0
          %vm769 = vcmp.gt.f32.partialorder %v754, 0.0
          %vm770 = vcmp.gt.f32.partialorder %v757, 0.0
          %vm771 = vcmp.gt.f32.partialorder %v759, 0.0
          %vm772 = vcmp.gt.f32.partialorder %v762, 0.0
          %vm773 = vcmp.gt.f32.partialorder %v764, 0.0
          %v774 = vmul.f32 %v747, 1.442695
          %v775 = vpow.pop %v774
          %v776 = vmul.f32 %v749, 1.442695
          %v777 = vpow.pop %v776
          %v778 = vmul.f32 %v752, 1.442695
          %v779 = vpow.pop %v778
          %v780 = vmul.f32 %v754, 1.442695
          %v781 = vpow.pop %v780
          %v782 = vmul.f32 %v757, 1.442695
          %v783 = vpow.pop %v782
          %v784 = vmul.f32 %v759, 1.442695
          %v785 = vpow.pop %v784
          %v786 = vmul.f32 %v762, 1.442695
          %v787 = vpow.pop %v786
          %v788 = vmul.f32 %v764, 1.442695
          %v789 = vpow.pop %v788
          %v790 = vsub.f32 %v775, 1.0
          %v791 = vsub.f32 %v777, 1.0
          %v792 = vsub.f32 %v779, 1.0
          %v793 = vsub.f32 %v781, 1.0
          %v794 = vsub.f32 %v783, 1.0
          %v795 = vsub.f32 %v785, 1.0
          %v796 = vsub.f32 %v787, 1.0
          %v797 = vsub.f32 %v789, 1.0
          %v798 = vmul.f32 %v790, 1.6732632
          %v799 = vmul.f32 %v791, 1.6732632
          %v800 = vmul.f32 %v792, 1.6732632
          %v801 = vmul.f32 %v793, 1.6732632
          %v802 = vmul.f32 %v794, 1.6732632
          %v803 = vmul.f32 %v795, 1.6732632
          %v804 = vmul.f32 %v796, 1.6732632
          %v805 = vmul.f32 %v797, 1.6732632
          %v806 = vsel %vm766, %v747, %v798
          %v807 = vsel %vm767, %v749, %v799
          %v808 = vsel %vm768, %v752, %v800
          %v809 = vsel %vm769, %v754, %v801
          %v810 = vsel %vm770, %v757, %v802
          %v811 = vsel %vm771, %v759, %v803
          %v812 = vsel %vm772, %v762, %v804
          %v813 = vsel %vm773, %v764, %v805
          %v814 = vmul.f32 %v806, 1.050701
          %v815 = vmul.f32 %v807, 1.050701
          %v816 = vmul.f32 %v808, 1.050701
          %v817 = vmul.f32 %v809, 1.050701
          %v818 = vmul.f32 %v810, 1.050701
          %v819 = vmul.f32 %v811, 1.050701
          %v820 = vmul.f32 %v812, 1.050701
          %v821 = vmul.f32 %v813, 1.050701
          %v822 = vpack.c.bf16 %v814, %v814
          %v823 = vpack.c.bf16 %v815, %v815
          %v824 = vpack.c.bf16 %v816, %v816
          %v825 = vpack.c.bf16 %v817, %v817
          %v826 = vpack.c.bf16 %v818, %v818
          %v827 = vpack.c.bf16 %v819, %v819
          %v828 = vpack.c.bf16 %v820, %v820
          %v829 = vpack.c.bf16 %v821, %v821
          %830 = vst [vmem:[%s358] sm:$0xf] %v822
          %831 = vst [vmem:[%s358 + $0x4] sm:$0xf] %v823
          %832 = vst [vmem:[%s358 + $0x8] sm:$0xf] %v824
          %833 = vst [vmem:[%s358 + $0xc] sm:$0xf] %v825
          %834 = vst [vmem:[%s358 + $0x10] sm:$0xf] %v826
          %835 = vst [vmem:[%s358 + $0x14] sm:$0xf] %v827
          %836 = vst [vmem:[%s358 + $0x18] sm:$0xf] %v828
          %837 = vst [vmem:[%s358 + $0x1c] sm:$0xf] %v829
        $region64: #{tpu_custom_call.1} parent=39 // pred_fallthru
          _
        %s838 = sand.u32 %s168, 1
        %s839 = scalar_lea.sflag [#allocation5], %s838
        %s840 = sand.u32 %s168, 1
        %s841 = smul.addr %s840, 32
        %s842 = scalar_lea.vmem [#allocation11], %s841
        // Predicated region
        $region65: #{tpu_custom_call.1} parent=39 // pred_check
          %p843 = pneg %p178
        $region66: #{tpu_custom_call.1} parent=39 // pred_check_branch
          %845 = sbr.rel (%p843) target = $region68
        $region67: #{tpu_custom_call.1} parent=39 // pred_region
          %s846 = smul.u32 8, %s30
          %848 = vsyncadd %s839, 0
          %s849 = smul.addr %s846, 4
          %s850 = scalar_lea.hbm %s5, %s849
          %s851 = sshll.u32 %s842, 4
          %s852 = int_to_ptr.vmem [resolvable:$true] %s851
          %s853 = sshll.u32 %s850, 4
          %s854 = int_to_ptr.hbm [resolvable:$true] %s853
          %859 = dma.vmem_to_hbm [thread:$0]  %s852, 512, %s854, %s839, 64, 64, 4
        $region68: #{tpu_custom_call.1} parent=39 // pred_fallthru
          _
      $region40: #{tpu_custom_call.1} parent=5 // pred_fallthru
        _
      %p860 = scmp.le.s32.totalorder 2, %s21
      // Predicated region
      $region69: #{tpu_custom_call.1} parent=5 // pred_check
        %p861 = pneg %p860
      $region70: #{tpu_custom_call.1} parent=5 // pred_check_branch
        %863 = sbr.rel (%p861) target = $region72
      $region71: #{tpu_custom_call.1} parent=5 // pred_region
        %s864 = ssub.s32 %s21, 2
        // Predicated region
        $region73: #{tpu_custom_call.1} parent=71 // pred_check
          %p865 = pneg %p184
        $region74: #{tpu_custom_call.1} parent=71 // pred_check_branch
          %867 = sbr.rel (%p865) target = $region76
        $region75: #{tpu_custom_call.1} parent=71 // pred_region
          %s868 = sand.u32 %s169, 1
          %s869 = scalar_lea.sflag [#allocation5], %s868
          %s870 = sand.u32 %s169, 1
          %s871 = smul.addr %s870, 32
          %s872 = scalar_lea.vmem [#allocation11], %s871
          %874 = dma.done %s869, 512
        $region76: #{tpu_custom_call.1} parent=71 // pred_fallthru
          _
      $region72: #{tpu_custom_call.1} parent=5 // pred_fallthru
        _
    $region6: #{tpu_custom_call.1} parent=1 // loop_footer
      %s25 = sadd.s32 1, %s21
    $region7: #{tpu_custom_call.1} parent=1 // loop_footer_branch
      %20 = sbr.rel target = $region3
    $region8: #{tpu_custom_call.1} parent=1 // loop_exit
      _
    %875 = vsyncpa [#allocation4], 1
    %s876 = scalar_lea.sflag [#allocation4], 1
    %877 = vsyncpa %s876, 1
    %878 = vsyncpa [#allocation7], 1
    %s879 = scalar_lea.sflag [#allocation7], 1
    %880 = vsyncpa %s879, 1
    %881 = vsyncpa [#allocation10], 1
    %882 = vsyncpa [#allocation5], 1
    %s883 = scalar_lea.sflag [#allocation5], 1
    %884 = vsyncpa %s883, 1

</llo_original>
